<compile_context>
chip_gen: v7x
topology: tpu7x:2x2x1
jax: 0.10.0
libtpu: 0.0.40
codegen_flags: <defaults>
</compile_context>

<pallas_src>
import functools

import jax
import jax.numpy as jnp
import numpy as np
from jax import lax
from jax.experimental import pallas as pl
from jax.experimental.pallas import tpu as pltpu


def _round_up(x, m):
    return (x + m - 1) // m * m


def _residual_block_kernel(alpha_ref, x_ref, w1_ref, s1_ref, w2_ref, s2_ref,
                           mask_ref, out_ref, *, W, L_pad, PAD):
    Wp = W + 2
    EXT = Wp + 1                         # max |tap offset| on the flattened padded domain
    B, Cp = out_ref.shape[0], out_ref.shape[1]

    w1 = w1_ref[...]                     # (Cp, 9*Cp) folded conv1*BN1 weights
    s1 = s1_ref[...]                     # (Cp, 1)    folded bias+BN shift
    w2 = w2_ref[...]
    s2 = s2_ref[...]
    mask = mask_ref[...]                 # (1, L_pad) 1.0 on interior pixels, 0 on halo/pad
    alpha = alpha_ref[0, 0]              # PReLU scalar, read from SMEM

    def patches(src):
        # im2col as a value: 9 static lane-shifted (Cp, L_pad) slices stacked on
        # the sublane axis -> (9*Cp, L_pad).  Every piece is a full 8-sublane
        # group and a 128-lane multiple, so assembly needs no masked partial
        # stores and the result feeds the MXU directly (no patch scratch).
        taps = [src[:, PAD - EXT + dy * Wp + dx: PAD - EXT + dy * Wp + dx + L_pad]
                for dy in range(3) for dx in range(3)]
        return jnp.concatenate(taps, axis=0)

    zeros_pad = jnp.zeros((Cp, PAD), jnp.float32)

    for b in range(B):                   # images_per_step, unrolled at trace time
        x = x_ref[b]                     # (Cp, PAD+L_pad+PAD), data at lanes [PAD, PAD+L)
        # centre tap == padded-domain input == identity branch (aligned slab, free)
        identity = x[:, PAD:PAD + L_pad]

        # ---- conv1 + BN1 (folded) + PReLU ----
        o1 = jnp.dot(w1, patches(x), preferred_element_type=jnp.float32) + s1
        o1 = jnp.where(o1 > 0, o1, alpha * o1)
        o1 = o1 * mask                   # re-zero halo + lane padding -> zero padding for conv2

        # ---- conv2 + BN2 (folded) + residual add ----
        src2 = jnp.concatenate([zeros_pad, o1, zeros_pad], axis=1)  # 128-aligned lane concat
        o2 = jnp.dot(w2, patches(src2), preferred_element_type=jnp.float32) + s2

        out_ref[b] = (o2 + identity).astype(out_ref.dtype)


def residual_block(x_nchw, W1, b1, g1, be1, m1, v1, alpha,
                   W2, b2, g2, be2, m2, v2, eps=1e-5, images_per_step=None):
    """x_nchw: (N, C, H, W) float32 (PyTorch layout). Returns (N, C, H, W)."""
    N, C, H, W = x_nchw.shape
    Hp, Wp = H + 2, W + 2
    L = Hp * Wp
    L_pad = _round_up(L, 128)            # lane-dense slabs -> unmasked vst
    PAD = 128                            # 128-aligned halo extension on the lane axis
    L_ext = PAD + L_pad + PAD
    Cp = _round_up(max(C, 8), 8)         # full 8-sublane occupancy
    assert PAD >= Wp + 1

    if images_per_step is None:
        # grid=(2,) default: one group per TensorCore on v7x.  On v5e/v6e pass
        # images_per_step=N to fold the whole batch into a single grid step.
        images_per_step = N // 2 if (N % 2 == 0 and N >= 2) else 1
    B = images_per_step
    assert N % B == 0, "images_per_step must divide the batch"

    x = x_nchw.astype(jnp.float32)
    # "same" zero padding, flatten padded spatial dims onto the lane axis,
    # pad channels to Cp and place the data at lane offset PAD.
    x_pad = jnp.pad(x, ((0, 0), (0, 0), (1, 1), (1, 1))).reshape(N, C, L)
    x_ext = jnp.pad(x_pad, ((0, 0), (0, Cp - C), (PAD, L_ext - PAD - L)))

    # Fold conv bias + BatchNorm (inference form) into weights + per-channel shift,
    # padded to Cp channels (zero rows/columns for the pad channels).
    def fold(Wt, b, g, be, m, v):
        s = g / jnp.sqrt(v + eps)                                    # (C,)
        wk = jnp.transpose(Wt, (0, 2, 3, 1)).reshape(C, 9, C)        # (Cout, tap, Cin)
        wk = wk * s[:, None, None]
        wp = jnp.zeros((Cp, 9, Cp), jnp.float32).at[:C, :, :C].set(wk)
        shift = jnp.zeros((Cp, 1), jnp.float32).at[:C, 0].set(b * s + be - m * s)
        return wp.reshape(Cp, 9 * Cp), shift

    w1f, s1f = fold(W1, b1, g1, be1, m1, v1)
    w2f, s2f = fold(W2, b2, g2, be2, m2, v2)

    # Interior mask on the flattened padded domain, zero on halo and lane padding.
    mask = jnp.zeros((Hp, Wp), jnp.float32).at[1:H + 1, 1:W + 1].set(1.0)
    mask = jnp.pad(mask.reshape(1, L), ((0, 0), (0, L_pad - L)))

    alpha_arr = jnp.full((1, 1), alpha, jnp.float32)

    kernel = functools.partial(_residual_block_kernel, W=W, L_pad=L_pad, PAD=PAD)
    out_flat = pl.pallas_call(
        kernel,
        out_shape=jax.ShapeDtypeStruct((N, Cp, L_pad), jnp.float32),
        grid_spec=pltpu.PrefetchScalarGridSpec(
            num_scalar_prefetch=0,
            grid=(N // B,),
            in_specs=[
                pl.BlockSpec(memory_space=pltpu.MemorySpace.SMEM),    # PReLU alpha
                pl.BlockSpec((B, Cp, L_ext), lambda n: (n, 0, 0)),    # extended input
                pl.BlockSpec((Cp, 9 * Cp), lambda n: (0, 0)),         # folded W1
                pl.BlockSpec((Cp, 1), lambda n: (0, 0)),              # shift1
                pl.BlockSpec((Cp, 9 * Cp), lambda n: (0, 0)),         # folded W2
                pl.BlockSpec((Cp, 1), lambda n: (0, 0)),              # shift2
                pl.BlockSpec((1, L_pad), lambda n: (0, 0)),           # interior mask
            ],
            out_specs=pl.BlockSpec((B, Cp, L_pad), lambda n: (n, 0, 0)),
        ),
        compiler_params=pltpu.CompilerParams(
            dimension_semantics=("parallel",)),
    )(alpha_arr, x_ext, w1f, s1f, w2f, s2f, mask)

    # drop pad channels / lane padding, back to NCHW, drop the 1-px halo
    return out_flat[:, :C, :L].reshape(N, C, Hp, Wp)[:, :, 1:H + 1, 1:W + 1]


def ref_forward(x, W1, bb1, g1, be1, m1, v1, alpha,
                W2, bb2, g2, be2, m2, v2, eps=1e-5):
    """Pure-JAX NCHW reference (inference-mode BN)."""
    dn = ('NCHW', 'OIHW', 'NCHW')

    def conv(x, Wt, b):
        y = lax.conv_general_dilated(x, Wt, (1, 1), ((1, 1), (1, 1)),
                                     dimension_numbers=dn)
        return y + b[None, :, None, None]

    def bn(x, g, be, m, v):
        return ((x - m[None, :, None, None])
                / jnp.sqrt(v[None, :, None, None] + eps)
                * g[None, :, None, None] + be[None, :, None, None])

    out = bn(conv(x, W1, bb1), g1, be1, m1, v1)
    out = jnp.where(out > 0, out, alpha * out)
    out = bn(conv(out, W2, bb2), g2, be2, m2, v2)
    return out + x


if __name__ == "__main__":
    N, C, H, W = 2, 4, 16, 16
    eps = 1e-5

    key = jax.random.PRNGKey(0)
    ks = jax.random.split(key, 14)
    x = jax.random.normal(ks[0], (N, C, H, W), jnp.float32)

    # conv weights in PyTorch OIHW layout; deterministic synthetic init
    W1 = jax.random.normal(ks[1], (C, C, 3, 3), jnp.float32) * 0.1
    bb1 = jax.random.normal(ks[2], (C,), jnp.float32) * 0.1
    g1 = jax.random.uniform(ks[3], (C,), jnp.float32, 0.5, 1.5)
    be1 = jax.random.normal(ks[4], (C,), jnp.float32) * 0.1
    m1 = jax.random.normal(ks[5], (C,), jnp.float32) * 0.1
    v1 = jax.random.uniform(ks[6], (C,), jnp.float32, 0.5, 1.5)

    W2 = jax.random.normal(ks[7], (C, C, 3, 3), jnp.float32) * 0.1
    bb2 = jax.random.normal(ks[8], (C,), jnp.float32) * 0.1
    g2 = jax.random.uniform(ks[9], (C,), jnp.float32, 0.5, 1.5)
    be2 = jax.random.normal(ks[10], (C,), jnp.float32) * 0.1
    m2 = jax.random.normal(ks[11], (C,), jnp.float32) * 0.1
    v2 = jax.random.uniform(ks[12], (C,), jnp.float32, 0.5, 1.5)

    alpha = jnp.float32(0.25)  # nn.PReLU() default init

    out = residual_block(x, W1, bb1, g1, be1, m1, v1, alpha,
                         W2, bb2, g2, be2, m2, v2, eps=eps)
    out = jax.block_until_ready(out)

    ref = ref_forward(x, W1, bb1, g1, be1, m1, v1, alpha,
                      W2, bb2, g2, be2, m2, v2, eps=eps)
    ref = jax.block_until_ready(ref)

    np.testing.assert_allclose(np.asarray(out), np.asarray(ref),
                               rtol=1e-4, atol=1e-4)
    print("KERNEL_OK")
</pallas_src>

<mosaic_0001>
module attributes {stable_mosaic.version = 11 : i64} {
  func.func @_residual_block_kernel(%arg0: i32, %arg1: memref<1x1xf32, #tpu.memory_space<smem>>, %arg2: memref<1x8x640xf32, #tpu.memory_space<vmem>>, %arg3: memref<8x72xf32, #tpu.memory_space<vmem>>, %arg4: memref<8x1xf32, #tpu.memory_space<vmem>>, %arg5: memref<8x72xf32, #tpu.memory_space<vmem>>, %arg6: memref<8x1xf32, #tpu.memory_space<vmem>>, %arg7: memref<1x384xf32, #tpu.memory_space<vmem>>, %arg8: memref<1x8x384xf32, #tpu.memory_space<vmem>>) attributes {dimension_semantics = [#tpu.dimension_semantics<parallel>], iteration_bounds = array<i64: 2>, scalar_prefetch = 0 : i64, scratch_operands = 0 : i64, tpu.core_type = #tpu.core_type<tc>, window_params = [{transform_indices = @transform_0, window_bounds = array<i64: 1, 1>}, {transform_indices = @transform_1, window_bounds = array<i64: 1, 8, 640>}, {pipeline_mode = #tpu.pipeline_mode<synchronous>, transform_indices = @transform_2, window_bounds = array<i64: 8, 72>}, {pipeline_mode = #tpu.pipeline_mode<synchronous>, transform_indices = @transform_3, window_bounds = array<i64: 8, 1>}, {pipeline_mode = #tpu.pipeline_mode<synchronous>, transform_indices = @transform_4, window_bounds = array<i64: 8, 72>}, {pipeline_mode = #tpu.pipeline_mode<synchronous>, transform_indices = @transform_5, window_bounds = array<i64: 8, 1>}, {pipeline_mode = #tpu.pipeline_mode<synchronous>, transform_indices = @transform_6, window_bounds = array<i64: 1, 384>}, {transform_indices = @transform_7, window_bounds = array<i64: 1, 8, 384>}]} {
    %c0 = arith.constant 0 : index
    %c0_0 = arith.constant 0 : index
    %0 = vector.load %arg3[%c0, %c0_0] : memref<8x72xf32, #tpu.memory_space<vmem>>, vector<8x72xf32>
    %c0_1 = arith.constant 0 : index
    %c0_2 = arith.constant 0 : index
    %1 = vector.load %arg4[%c0_1, %c0_2] : memref<8x1xf32, #tpu.memory_space<vmem>>, vector<8x1xf32>
    %c0_3 = arith.constant 0 : index
    %c0_4 = arith.constant 0 : index
    %2 = vector.load %arg5[%c0_3, %c0_4] : memref<8x72xf32, #tpu.memory_space<vmem>>, vector<8x72xf32>
    %c0_5 = arith.constant 0 : index
    %c0_6 = arith.constant 0 : index
    %3 = vector.load %arg6[%c0_5, %c0_6] : memref<8x1xf32, #tpu.memory_space<vmem>>, vector<8x1xf32>
    %c0_7 = arith.constant 0 : index
    %c0_8 = arith.constant 0 : index
    %4 = vector.load %arg7[%c0_7, %c0_8] : memref<1x384xf32, #tpu.memory_space<vmem>>, vector<1x384xf32>
    %c0_9 = arith.constant 0 : index
    %c0_10 = arith.constant 0 : index
    %5 = memref.load %arg1[%c0_9, %c0_10] : memref<1x1xf32, #tpu.memory_space<smem>>
    %cst = arith.constant 0.000000e+00 : f32
    %6 = vector.broadcast %cst : f32 to vector<8x128xf32>
    %c0_11 = arith.constant 0 : index
    %c0_12 = arith.constant 0 : index
    %c0_13 = arith.constant 0 : index
    %7 = vector.load %arg2[%c0_11, %c0_12, %c0_13] : memref<1x8x640xf32, #tpu.memory_space<vmem>>, vector<1x8x640xf32>
    %8 = vector.shape_cast %7 : vector<1x8x640xf32> to vector<8x640xf32>
    %9 = vector.extract_strided_slice %8 {offsets = [0, 128], sizes = [8, 384], strides = [1, 1]} : vector<8x640xf32> to vector<8x384xf32>
    %10 = vector.extract_strided_slice %8 {offsets = [0, 109], sizes = [8, 384], strides = [1, 1]} : vector<8x640xf32> to vector<8x384xf32>
    %11 = vector.extract_strided_slice %8 {offsets = [0, 110], sizes = [8, 384], strides = [1, 1]} : vector<8x640xf32> to vector<8x384xf32>
    %12 = vector.extract_strided_slice %8 {offsets = [0, 111], sizes = [8, 384], strides = [1, 1]} : vector<8x640xf32> to vector<8x384xf32>
    %13 = vector.extract_strided_slice %8 {offsets = [0, 127], sizes = [8, 384], strides = [1, 1]} : vector<8x640xf32> to vector<8x384xf32>
    %14 = vector.extract_strided_slice %8 {offsets = [0, 128], sizes = [8, 384], strides = [1, 1]} : vector<8x640xf32> to vector<8x384xf32>
    %15 = vector.extract_strided_slice %8 {offsets = [0, 129], sizes = [8, 384], strides = [1, 1]} : vector<8x640xf32> to vector<8x384xf32>
    %16 = vector.extract_strided_slice %8 {offsets = [0, 145], sizes = [8, 384], strides = [1, 1]} : vector<8x640xf32> to vector<8x384xf32>
    %17 = vector.extract_strided_slice %8 {offsets = [0, 146], sizes = [8, 384], strides = [1, 1]} : vector<8x640xf32> to vector<8x384xf32>
    %18 = vector.extract_strided_slice %8 {offsets = [0, 147], sizes = [8, 384], strides = [1, 1]} : vector<8x640xf32> to vector<8x384xf32>
    %19 = tpu.concatenate %10, %11, %12, %13, %14, %15, %16, %17, %18 in 0 : vector<8x384xf32>, vector<8x384xf32>, vector<8x384xf32>, vector<8x384xf32>, vector<8x384xf32>, vector<8x384xf32>, vector<8x384xf32>, vector<8x384xf32>, vector<8x384xf32> -> vector<72x384xf32>
    %cst_14 = arith.constant dense<0.000000e+00> : vector<8x384xf32>
    %20 = tpu.matmul %0, %19, %cst_14 {dimension_numbers = #tpu.dot_dimension_numbers<[1], [0], [0], [1], [0, 0, 1, 1], [], []>} : vector<8x72xf32>, vector<72x384xf32>, vector<8x384xf32> -> vector<8x384xf32>
    %21 = vector.broadcast %1 : vector<8x1xf32> to vector<8x384xf32>
    %22 = arith.addf %20, %21 : vector<8x384xf32>
    %cst_15 = arith.constant 0.000000e+00 : f32
    %23 = vector.broadcast %cst_15 : f32 to vector<8x384xf32>
    %24 = arith.cmpf ogt, %22, %23 : vector<8x384xf32>
    %25 = vector.broadcast %5 : f32 to vector<8x384xf32>
    %26 = arith.mulf %25, %22 : vector<8x384xf32>
    %27 = arith.select %24, %22, %26 : vector<8x384xi1>, vector<8x384xf32>
    %28 = vector.broadcast %4 : vector<1x384xf32> to vector<8x384xf32>
    %29 = arith.mulf %27, %28 : vector<8x384xf32>
    %30 = tpu.concatenate %6, %29, %6 in 1 : vector<8x128xf32>, vector<8x384xf32>, vector<8x128xf32> -> vector<8x640xf32>
    %31 = vector.extract_strided_slice %30 {offsets = [0, 109], sizes = [8, 384], strides = [1, 1]} : vector<8x640xf32> to vector<8x384xf32>
    %32 = vector.extract_strided_slice %30 {offsets = [0, 110], sizes = [8, 384], strides = [1, 1]} : vector<8x640xf32> to vector<8x384xf32>
    %33 = vector.extract_strided_slice %30 {offsets = [0, 111], sizes = [8, 384], strides = [1, 1]} : vector<8x640xf32> to vector<8x384xf32>
    %34 = vector.extract_strided_slice %30 {offsets = [0, 127], sizes = [8, 384], strides = [1, 1]} : vector<8x640xf32> to vector<8x384xf32>
    %35 = vector.extract_strided_slice %30 {offsets = [0, 128], sizes = [8, 384], strides = [1, 1]} : vector<8x640xf32> to vector<8x384xf32>
    %36 = vector.extract_strided_slice %30 {offsets = [0, 129], sizes = [8, 384], strides = [1, 1]} : vector<8x640xf32> to vector<8x384xf32>
    %37 = vector.extract_strided_slice %30 {offsets = [0, 145], sizes = [8, 384], strides = [1, 1]} : vector<8x640xf32> to vector<8x384xf32>
    %38 = vector.extract_strided_slice %30 {offsets = [0, 146], sizes = [8, 384], strides = [1, 1]} : vector<8x640xf32> to vector<8x384xf32>
    %39 = vector.extract_strided_slice %30 {offsets = [0, 147], sizes = [8, 384], strides = [1, 1]} : vector<8x640xf32> to vector<8x384xf32>
    %40 = tpu.concatenate %31, %32, %33, %34, %35, %36, %37, %38, %39 in 0 : vector<8x384xf32>, vector<8x384xf32>, vector<8x384xf32>, vector<8x384xf32>, vector<8x384xf32>, vector<8x384xf32>, vector<8x384xf32>, vector<8x384xf32>, vector<8x384xf32> -> vector<72x384xf32>
    %cst_16 = arith.constant dense<0.000000e+00> : vector<8x384xf32>
    %41 = tpu.matmul %2, %40, %cst_16 {dimension_numbers = #tpu.dot_dimension_numbers<[1], [0], [0], [1], [0, 0, 1, 1], [], []>} : vector<8x72xf32>, vector<72x384xf32>, vector<8x384xf32> -> vector<8x384xf32>
    %42 = vector.broadcast %3 : vector<8x1xf32> to vector<8x384xf32>
    %43 = arith.addf %41, %42 : vector<8x384xf32>
    %44 = arith.addf %43, %9 : vector<8x384xf32>
    %c0_17 = arith.constant 0 : index
    %c0_18 = arith.constant 0 : index
    %c0_19 = arith.constant 0 : index
    %45 = vector.load %arg8[%c0_17, %c0_18, %c0_19] : memref<1x8x384xf32, #tpu.memory_space<vmem>>, vector<1x8x384xf32>
    %46 = vector.shape_cast %45 : vector<1x8x384xf32> to vector<8x384xf32>
    %47 = vector.shape_cast %44 : vector<8x384xf32> to vector<1x8x384xf32>
    tpu.vector_store %arg8[%c0_17, %c0_18, %c0_19], %47 {strides = array<i32>} : memref<1x8x384xf32, #tpu.memory_space<vmem>>, vector<1x8x384xf32>,
    return
  }
  func.func @transform_0(%arg0: i32) -> (i32, i32) {
    %c0_i32 = arith.constant 0 : i32
    %c0_i32_0 = arith.constant 0 : i32
    %c0_i32_1 = arith.constant 0 : i32
    return %c0_i32, %c0_i32_0 : i32, i32
  }
  func.func @transform_1(%arg0: i32) -> (i32, i32, i32) {
    %c0_i32 = arith.constant 0 : i32
    %c0_i32_0 = arith.constant 0 : i32
    %c0_i32_1 = arith.constant 0 : i32
    return %arg0, %c0_i32, %c0_i32_0 : i32, i32, i32
  }
  func.func @transform_2(%arg0: i32) -> (i32, i32) {
    %c0_i32 = arith.constant 0 : i32
    %c0_i32_0 = arith.constant 0 : i32
    %c0_i32_1 = arith.constant 0 : i32
    return %c0_i32, %c0_i32_0 : i32, i32
  }
  func.func @transform_3(%arg0: i32) -> (i32, i32) {
    %c0_i32 = arith.constant 0 : i32
    %c0_i32_0 = arith.constant 0 : i32
    %c0_i32_1 = arith.constant 0 : i32
    return %c0_i32, %c0_i32_0 : i32, i32
  }
  func.func @transform_4(%arg0: i32) -> (i32, i32) {
    %c0_i32 = arith.constant 0 : i32
    %c0_i32_0 = arith.constant 0 : i32
    %c0_i32_1 = arith.constant 0 : i32
    return %c0_i32, %c0_i32_0 : i32, i32
  }
  func.func @transform_5(%arg0: i32) -> (i32, i32) {
    %c0_i32 = arith.constant 0 : i32
    %c0_i32_0 = arith.constant 0 : i32
    %c0_i32_1 = arith.constant 0 : i32
    return %c0_i32, %c0_i32_0 : i32, i32
  }
  func.func @transform_6(%arg0: i32) -> (i32, i32) {
    %c0_i32 = arith.constant 0 : i32
    %c0_i32_0 = arith.constant 0 : i32
    %c0_i32_1 = arith.constant 0 : i32
    return %c0_i32, %c0_i32_0 : i32, i32
  }
  func.func @transform_7(%arg0: i32) -> (i32, i32, i32) {
    %c0_i32 = arith.constant 0 : i32
    %c0_i32_0 = arith.constant 0 : i32
    %c0_i32_1 = arith.constant 0 : i32
    return %arg0, %c0_i32, %c0_i32_0 : i32, i32, i32
  }
}

</mosaic_0001>

<llo_original>
// kernel: tpu_custom_call.1
$region0: #{tpu_custom_call.1}
  #allocation0 [shape = 'u32[]', space=smem, size = 0x4, offset = 0x4, fixed_abs, tag = 'smem constant byte address 0x4 - core index']
  #allocation1 [shape = 'u32[144,128]{1,0:T(1,128)}', space=vmem, size = 0x12000, scoped, tag = 'internal scratch']
  #allocation2 [shape = 'f32[1,1]{1,0:T(1,128)S(6)}', space=smem, size = 0x200, scoped, tag = 'scoped memory for tpu_custom_call.1']
  %s0 = inlined_call_operand.<no memory space> [shape: f32[1,1], index: 0, kind: input, shape index: {}]
  %s1 = inlined_call_operand.hbm [shape: f32[2,8,640], index: 1, kind: input, shape index: {}]
  %s2 = inlined_call_operand.vmem [shape: f32[8,72], index: 2, kind: input, shape index: {}]
  %s3 = inlined_call_operand.vmem [shape: f32[8,1], index: 3, kind: input, shape index: {}]
  %s4 = inlined_call_operand.vmem [shape: f32[8,72], index: 4, kind: input, shape index: {}]
  %s5 = inlined_call_operand.vmem [shape: f32[8,1], index: 5, kind: input, shape index: {}]
  %s6 = inlined_call_operand.vmem [shape: f32[1,384], index: 6, kind: input, shape index: {}]
  %s7 = inlined_call_operand.hbm [shape: f32[2,8,384], index: 7, kind: output, shape index: {}]
  %s8 = sld [smem:[#allocation0]]
  $region65: #{tpu_custom_call.1} parent=0
    _
  %s10 = ssub.s32 1, %s8
  %s11 = scalar_select 0, %s10, %s8
  %12 = sst [smem:[#allocation2]] %s0
  $region1: #{tpu_custom_call.1} parent=0
    #allocation3 [shape = 'u8[40960]{0}', space=vmem, size = 0xa000, scoped, tag = 'input window, operand 1']
    #allocation4 [shape = 's32[2]{0}', space=sflag, size = 0x8, scoped, tag = 'scoped memory for tpu_custom_call.1']
    #allocation5 [shape = 's32[2]{0}', space=sflag, size = 0x8, scoped, tag = 'scoped memory for tpu_custom_call.1']
    #allocation6 [shape = 'u8[24576]{0}', space=vmem, size = 0x6000, scoped, tag = 'output window, operand 0']
    %13 = vsyncpa [#allocation4], 0
    %s14 = scalar_lea.sflag [#allocation4], 1
    %15 = vsyncpa %s14, 0
    %16 = vsyncpa [#allocation5], 0
    %s17 = scalar_lea.sflag [#allocation5], 1
    %18 = vsyncpa %s17, 0
    loop: start=0, step=1, limit=4
    $region2: #{tpu_custom_call.1} parent=1 // loop_pre_header
      _
    $region3: #{tpu_custom_call.1} parent=1 // loop_header
      %s20 = sphi 0, %s24
      %p21 = scmp.ge.s32.totalorder %s20, 4
      %s28 = sphi 0, %s28
      %s30 = sphi 0, %s28
      %s31 = sphi 0, %s30
      %s45 = sphi 0, %s31
      %s51 = sphi 0, %s53
      %s54 = sphi 0, %s51
      %s55 = sphi 0, %s54
      %s71 = sphi 0, %s55
      %s75 = sphi 0, %s75
      %s77 = sphi 0, %s75
      %s78 = sphi 0, %s77
      %s92 = sphi 0, %s78
      %s96 = sphi 0, %s96
      %s98 = sphi 0, %s96
      %s99 = sphi 0, %s98
      %s113 = sphi 0, %s99
      %s117 = sphi 0, %s117
      %s119 = sphi 0, %s117
      %s120 = sphi 0, %s119
      %s134 = sphi 0, %s120
      %s138 = sphi 0, %s138
      %s140 = sphi 0, %s138
      %s141 = sphi 0, %s140
      %s155 = sphi 0, %s141
      %s159 = sphi 0, %s159
      %s161 = sphi 0, %s159
      %s162 = sphi 0, %s161
      %s176 = sphi 0, %s162
      %s182 = sphi 0, %s184
      %s185 = sphi 0, %s182
      %s186 = sphi 0, %s185
      %s202 = sphi 0, %s186
    $region4: #{tpu_custom_call.1} parent=1 // loop_header_branch
      %23 = sbr.rel (%p21) target = $region8
    $region5: #{tpu_custom_call.1} parent=1 // loop_body
      %s25 = ssub.s32 %s20, 1
      %s26 = ssub.s32 %s20, 2
      %s27 = sadd.s32 %s20, 1
      %s29 = sadd.s32 %s28, 1
      %p32 = scmp.eq.s32.totalorder %s20, 1
      %p33 = scmp.ne.s32.totalorder %s28, %s30
      %p34 = scmp.eq.s32.totalorder %s20, 0
      %p35 = por %p33, %p34
      %p36 = scmp.ne.s32.totalorder %s28, %s30
      %p37 = scmp.eq.s32.totalorder %s25, 1
      %p38 = por %p36, %p37
      %p39 = scmp.ne.s32.totalorder %s30, %s31
      %p40 = scmp.eq.s32.totalorder %s25, 0
      %p41 = por %p39, %p40
      %p42 = scmp.ne.s32.totalorder %s30, %s31
      %p43 = scmp.eq.s32.totalorder %s26, 1
      %p44 = por %p42, %p43
      %p46 = scmp.ne.s32.totalorder %s31, %s45
      %p47 = scmp.eq.s32.totalorder %s26, 0
      %p48 = por %p46, %p47
      %s49 = ssub.s32 %s20, %s27
      %p50 = scmp.eq.s32.totalorder %s49, 0
      %s52 = sadd.s32 %s51, 1
      %s53 = scalar_select %p50, %s51, %s52
      %p56 = pneg %p50
      %p57 = scmp.eq.s32.totalorder %s20, 1
      %p58 = por %p56, %p57
      %p59 = scmp.ne.s32.totalorder %s51, %s54
      %p60 = scmp.eq.s32.totalorder %s20, 0
      %p61 = por %p59, %p60
      %p62 = scmp.ne.s32.totalorder %s51, %s54
      %p63 = scmp.eq.s32.totalorder %s25, 1
      %p64 = por %p62, %p63
      %p65 = scmp.ne.s32.totalorder %s54, %s55
      %p66 = scmp.eq.s32.totalorder %s25, 0
      %p67 = por %p65, %p66
      %p68 = scmp.ne.s32.totalorder %s54, %s55
      %p69 = scmp.eq.s32.totalorder %s26, 1
      %p70 = por %p68, %p69
      %p72 = scmp.ne.s32.totalorder %s55, %s71
      %p73 = scmp.eq.s32.totalorder %s26, 0
      %p74 = por %p72, %p73
      %s76 = sadd.s32 %s75, 1
      %p79 = scmp.eq.s32.totalorder %s20, 1
      %p80 = scmp.ne.s32.totalorder %s75, %s77
      %p81 = scmp.eq.s32.totalorder %s20, 0
      %p82 = por %p80, %p81
      %p83 = scmp.ne.s32.totalorder %s75, %s77
      %p84 = scmp.eq.s32.totalorder %s25, 1
      %p85 = por %p83, %p84
      %p86 = scmp.ne.s32.totalorder %s77, %s78
      %p87 = scmp.eq.s32.totalorder %s25, 0
      %p88 = por %p86, %p87
      %p89 = scmp.ne.s32.totalorder %s77, %s78
      %p90 = scmp.eq.s32.totalorder %s26, 1
      %p91 = por %p89, %p90
      %p93 = scmp.ne.s32.totalorder %s78, %s92
      %p94 = scmp.eq.s32.totalorder %s26, 0
      %p95 = por %p93, %p94
      %s97 = sadd.s32 %s96, 1
      %p100 = scmp.eq.s32.totalorder %s20, 1
      %p101 = scmp.ne.s32.totalorder %s96, %s98
      %p102 = scmp.eq.s32.totalorder %s20, 0
      %p103 = por %p101, %p102
      %p104 = scmp.ne.s32.totalorder %s96, %s98
      %p105 = scmp.eq.s32.totalorder %s25, 1
      %p106 = por %p104, %p105
      %p107 = scmp.ne.s32.totalorder %s98, %s99
      %p108 = scmp.eq.s32.totalorder %s25, 0
      %p109 = por %p107, %p108
      %p110 = scmp.ne.s32.totalorder %s98, %s99
      %p111 = scmp.eq.s32.totalorder %s26, 1
      %p112 = por %p110, %p111
      %p114 = scmp.ne.s32.totalorder %s99, %s113
      %p115 = scmp.eq.s32.totalorder %s26, 0
      %p116 = por %p114, %p115
      %s118 = sadd.s32 %s117, 1
      %p121 = scmp.eq.s32.totalorder %s20, 1
      %p122 = scmp.ne.s32.totalorder %s117, %s119
      %p123 = scmp.eq.s32.totalorder %s20, 0
      %p124 = por %p122, %p123
      %p125 = scmp.ne.s32.totalorder %s117, %s119
      %p126 = scmp.eq.s32.totalorder %s25, 1
      %p127 = por %p125, %p126
      %p128 = scmp.ne.s32.totalorder %s119, %s120
      %p129 = scmp.eq.s32.totalorder %s25, 0
      %p130 = por %p128, %p129
      %p131 = scmp.ne.s32.totalorder %s119, %s120
      %p132 = scmp.eq.s32.totalorder %s26, 1
      %p133 = por %p131, %p132
      %p135 = scmp.ne.s32.totalorder %s120, %s134
      %p136 = scmp.eq.s32.totalorder %s26, 0
      %p137 = por %p135, %p136
      %s139 = sadd.s32 %s138, 1
      %p142 = scmp.eq.s32.totalorder %s20, 1
      %p143 = scmp.ne.s32.totalorder %s138, %s140
      %p144 = scmp.eq.s32.totalorder %s20, 0
      %p145 = por %p143, %p144
      %p146 = scmp.ne.s32.totalorder %s138, %s140
      %p147 = scmp.eq.s32.totalorder %s25, 1
      %p148 = por %p146, %p147
      %p149 = scmp.ne.s32.totalorder %s140, %s141
      %p150 = scmp.eq.s32.totalorder %s25, 0
      %p151 = por %p149, %p150
      %p152 = scmp.ne.s32.totalorder %s140, %s141
      %p153 = scmp.eq.s32.totalorder %s26, 1
      %p154 = por %p152, %p153
      %p156 = scmp.ne.s32.totalorder %s141, %s155
      %p157 = scmp.eq.s32.totalorder %s26, 0
      %p158 = por %p156, %p157
      %s160 = sadd.s32 %s159, 1
      %p163 = scmp.eq.s32.totalorder %s20, 1
      %p164 = scmp.ne.s32.totalorder %s159, %s161
      %p165 = scmp.eq.s32.totalorder %s20, 0
      %p166 = por %p164, %p165
      %p167 = scmp.ne.s32.totalorder %s159, %s161
      %p168 = scmp.eq.s32.totalorder %s25, 1
      %p169 = por %p167, %p168
      %p170 = scmp.ne.s32.totalorder %s161, %s162
      %p171 = scmp.eq.s32.totalorder %s25, 0
      %p172 = por %p170, %p171
      %p173 = scmp.ne.s32.totalorder %s161, %s162
      %p174 = scmp.eq.s32.totalorder %s26, 1
      %p175 = por %p173, %p174
      %p177 = scmp.ne.s32.totalorder %s162, %s176
      %p178 = scmp.eq.s32.totalorder %s26, 0
      %p179 = por %p177, %p178
      %s180 = ssub.s32 %s20, %s27
      %p181 = scmp.eq.s32.totalorder %s180, 0
      %s183 = sadd.s32 %s182, 1
      %s184 = scalar_select %p181, %s182, %s183
      %p187 = pneg %p181
      %p188 = scmp.eq.s32.totalorder %s20, 1
      %p189 = por %p187, %p188
      %p190 = scmp.ne.s32.totalorder %s182, %s185
      %p191 = scmp.eq.s32.totalorder %s20, 0
      %p192 = por %p190, %p191
      %p193 = scmp.ne.s32.totalorder %s182, %s185
      %p194 = scmp.eq.s32.totalorder %s25, 1
      %p195 = por %p193, %p194
      %p196 = scmp.ne.s32.totalorder %s185, %s186
      %p197 = scmp.eq.s32.totalorder %s25, 0
      %p198 = por %p196, %p197
      %p199 = scmp.ne.s32.totalorder %s185, %s186
      %p200 = scmp.eq.s32.totalorder %s26, 1
      %p201 = por %p199, %p200
      %p203 = scmp.ne.s32.totalorder %s186, %s202
      %p204 = scmp.eq.s32.totalorder %s26, 0
      %p205 = por %p203, %p204
      %p206 = scmp.le.s32.totalorder 1, %s20
      %p207 = scmp.lt.s32.totalorder %s20, 3
      %p208 = pnand %p206, %p207
      %p209 = pneg %p208
      // Predicated region
      $region9: #{tpu_custom_call.1} parent=5 // pred_check
        _
      $region10: #{tpu_custom_call.1} parent=5 // pred_check_branch
        %211 = sbr.rel (%p208) target = $region12
      $region11: #{tpu_custom_call.1} parent=5 // pred_region
        %s212 = ssub.s32 %s20, 1
        // Predicated region
        $region13: #{tpu_custom_call.1} parent=11 // pred_check
          %p213 = pneg %p41
        $region14: #{tpu_custom_call.1} parent=11 // pred_check_branch
          %215 = sbr.rel (%p213) target = $region16
        $region15: #{tpu_custom_call.1} parent=11 // pred_region
          _
        $region16: #{tpu_custom_call.1} parent=11 // pred_fallthru
          _
        // Predicated region
        $region17: #{tpu_custom_call.1} parent=11 // pred_check
          %p216 = pneg %p88
        $region18: #{tpu_custom_call.1} parent=11 // pred_check_branch
          %218 = sbr.rel (%p216) target = $region20
        $region19: #{tpu_custom_call.1} parent=11 // pred_region
          _
        $region20: #{tpu_custom_call.1} parent=11 // pred_fallthru
          _
        // Predicated region
        $region21: #{tpu_custom_call.1} parent=11 // pred_check
          %p219 = pneg %p109
        $region22: #{tpu_custom_call.1} parent=11 // pred_check_branch
          %221 = sbr.rel (%p219) target = $region24
        $region23: #{tpu_custom_call.1} parent=11 // pred_region
          _
        $region24: #{tpu_custom_call.1} parent=11 // pred_fallthru
          _
        // Predicated region
        $region25: #{tpu_custom_call.1} parent=11 // pred_check
          %p222 = pneg %p130
        $region26: #{tpu_custom_call.1} parent=11 // pred_check_branch
          %224 = sbr.rel (%p222) target = $region28
        $region27: #{tpu_custom_call.1} parent=11 // pred_region
          _
        $region28: #{tpu_custom_call.1} parent=11 // pred_fallthru
          _
        // Predicated region
        $region29: #{tpu_custom_call.1} parent=11 // pred_check
          %p225 = pneg %p151
        $region30: #{tpu_custom_call.1} parent=11 // pred_check_branch
          %227 = sbr.rel (%p225) target = $region32
        $region31: #{tpu_custom_call.1} parent=11 // pred_region
          _
        $region32: #{tpu_custom_call.1} parent=11 // pred_fallthru
          _
        // Predicated region
        $region33: #{tpu_custom_call.1} parent=11 // pred_check
          %p228 = pneg %p172
        $region34: #{tpu_custom_call.1} parent=11 // pred_check_branch
          %230 = sbr.rel (%p228) target = $region36
        $region35: #{tpu_custom_call.1} parent=11 // pred_region
          _
        $region36: #{tpu_custom_call.1} parent=11 // pred_fallthru
          _
      $region12: #{tpu_custom_call.1} parent=5 // pred_fallthru
        _
      %p231 = scmp.lt.s32.totalorder %s20, 2
      // Predicated region
      $region37: #{tpu_custom_call.1} parent=5 // pred_check
        %p232 = pneg %p231
      $region38: #{tpu_custom_call.1} parent=5 // pred_check_branch
        %234 = sbr.rel (%p232) target = $region40
      $region39: #{tpu_custom_call.1} parent=5 // pred_region
        // Predicated region
        $region41: #{tpu_custom_call.1} parent=39 // pred_check
          %p235 = pneg %p61
        $region42: #{tpu_custom_call.1} parent=39 // pred_check_branch
          %237 = sbr.rel (%p235) target = $region44
        $region43: #{tpu_custom_call.1} parent=39 // pred_region
          %s238 = sand.u32 %s51, 1
          %s239 = scalar_lea.sflag [#allocation4], %s238
          %s240 = sand.u32 %s51, 1
          %s241 = smul.addr %s240, 40
          %s242 = scalar_lea.vmem [#allocation3], %s241
          %s244 = ssub.s32 640, 640
          %245 = vsyncadd %s239, %s244
          %s246 = smul.addr %s20, 5
          %s247 = smul.addr %s246, 128
          %s248 = scalar_lea.hbm %s1, %s247
          %s250 = sshll.u32 %s242, 4
          %s251 = int_to_ptr.vmem [resolvable:$true] %s250
          %253 = dma.hbm_to_vmem [thread:$0]  %s248, 640, %s251, %s239
        $region44: #{tpu_custom_call.1} parent=39 // pred_fallthru
          _
      $region40: #{tpu_custom_call.1} parent=5 // pred_fallthru
        _
      %p254 = scmp.le.s32.totalorder 1, %s20
      %p255 = scmp.lt.s32.totalorder %s20, 3
      %p256 = pnand %p254, %p255
      %p257 = pneg %p256
      // Predicated region
      $region45: #{tpu_custom_call.1} parent=5 // pred_check
        _
      $region46: #{tpu_custom_call.1} parent=5 // pred_check_branch
        %259 = sbr.rel (%p256) target = $region48
      $region47: #{tpu_custom_call.1} parent=5 // pred_region
        %s260 = ssub.s32 %s20, 1
        %s261 = sand.u32 %s54, 1
        %s262 = scalar_lea.sflag [#allocation4], %s261
        %s263 = sand.u32 %s54, 1
        %s264 = smul.addr %s263, 40
        %s265 = scalar_lea.vmem [#allocation3], %s264
        // Predicated region
        $region49: #{tpu_custom_call.1} parent=47 // pred_check
          %p266 = pneg %p67
        $region50: #{tpu_custom_call.1} parent=47 // pred_check_branch
          %268 = sbr.rel (%p266) target = $region52
        $region51: #{tpu_custom_call.1} parent=47 // pred_region
          %269 = dma.done %s262, 640
        $region52: #{tpu_custom_call.1} parent=47 // pred_fallthru
          _
        %p270 = pneg %p41
        %p271 = pneg %p38
        %s272 = sand.u32 %s54, 1
        %s273 = scalar_lea.sflag [#allocation4], %s272
        %s274 = sand.u32 %s54, 1
        %s275 = smul.addr %s274, 40
        %s276 = scalar_lea.vmem [#allocation3], %s275
        %p277 = pneg %p67
        %p278 = pneg %p64
        %p279 = pneg %p88
        %p280 = pneg %p85
        %p281 = pneg %p109
        %p282 = pneg %p106
        %p283 = pneg %p130
        %p284 = pneg %p127
        %p285 = pneg %p151
        %p286 = pneg %p148
        %p287 = pneg %p172
        %p288 = pneg %p169
        %p289 = pneg %p198
        %p290 = pneg %p195
        %s291 = sand.u32 %s185, 1
        %s292 = scalar_lea.sflag [#allocation5], %s291
        %s293 = sand.u32 %s185, 1
        %s294 = smul.addr %s293, 24
        %s295 = scalar_lea.vmem [#allocation6], %s294
        %v296 = vld [vmem:[%s2] sm:$0xff]
        %v297 = vld [vmem:[%s3] sm:$0xff]
        %v298 = vld [vmem:[%s4] sm:$0xff]
        %v299 = vld [vmem:[%s5] sm:$0xff]
        %v300 = vld [vmem:[%s6] sm:$0x7]
        %s301 = sld [smem:[#allocation2]]
        %v302 = vld [vmem:[%s265] sm:$0xff]
        %v303 = vld [vmem:[%s265 + $0x8] sm:$0xff]
        %v304 = vld [vmem:[%s265 + $0x10] sm:$0xff]
        %v305 = vld [vmem:[%s265 + $0x18] sm:$0xff]
        %v306 = vld [vmem:[%s265 + $0x20] sm:$0xff]
        %311 = vrot.lane.b32.xlu0 %v302, 127
        %v312 = vpop.permute.xlu0 %311
        %313 = vrot.lane.b32.xlu0 %v303, 127
        %v314 = vpop.permute.xlu0 %313
        %315 = vrot.lane.b32.xlu0 %v304, 127
        %v316 = vpop.permute.xlu0 %315
        %317 = vrot.lane.b32.xlu0 %v305, 127
        %v318 = vpop.permute.xlu0 %317
        %vm319 = vcmask 1039360
        %v320 = vsel %vm319, %v312, %v314
        %v321 = vsel %vm319, %v314, %v316
        %v322 = vsel %vm319, %v316, %v318
        %323 = vrot.lane.b32.xlu0 %v302, 126
        %v324 = vpop.permute.xlu0 %323
        %325 = vrot.lane.b32.xlu0 %v303, 126
        %v326 = vpop.permute.xlu0 %325
        %327 = vrot.lane.b32.xlu0 %v304, 126
        %v328 = vpop.permute.xlu0 %327
        %329 = vrot.lane.b32.xlu0 %v305, 126
        %v330 = vpop.permute.xlu0 %329
        %vm331 = vcmask 1031168
        %v332 = vsel %vm331, %v324, %v326
        %v333 = vsel %vm331, %v326, %v328
        %v334 = vsel %vm331, %v328, %v330
        %335 = vrot.lane.b32.xlu0 %v302, 110
        %v336 = vpop.permute.xlu0 %335
        %337 = vrot.lane.b32.xlu0 %v303, 110
        %v338 = vpop.permute.xlu0 %337
        %339 = vrot.lane.b32.xlu0 %v304, 110
        %v340 = vpop.permute.xlu0 %339
        %341 = vrot.lane.b32.xlu0 %v305, 110
        %v342 = vpop.permute.xlu0 %341
        %vm343 = vcmask 900096
        %v344 = vsel %vm343, %v336, %v338
        %v345 = vsel %vm343, %v338, %v340
        %v346 = vsel %vm343, %v340, %v342
        %347 = vrot.lane.b32.xlu0 %v303, 109
        %v348 = vpop.permute.xlu0 %347
        %349 = vrot.lane.b32.xlu0 %v304, 109
        %v350 = vpop.permute.xlu0 %349
        %351 = vrot.lane.b32.xlu0 %v305, 109
        %v352 = vpop.permute.xlu0 %351
        %vm353 = vcmask 891904
        %v354 = vsel %vm353, %v348, %v350
        %v355 = vsel %vm353, %v350, %v352
        %357 = vrot.lane.b32.xlu0 %v303, 108
        %v358 = vpop.permute.xlu0 %357
        %359 = vrot.lane.b32.xlu0 %v304, 108
        %v360 = vpop.permute.xlu0 %359
        %361 = vrot.lane.b32.xlu0 %v305, 108
        %v362 = vpop.permute.xlu0 %361
        %363 = vrot.lane.b32.xlu0 %v306, 108
        %v364 = vpop.permute.xlu0 %363
        %vm365 = vcmask 883712
        %v366 = vsel %vm365, %v358, %v360
        %v367 = vsel %vm365, %v360, %v362
        %v368 = vsel %vm365, %v362, %v364
        %369 = vrot.lane.b32.xlu0 %v303, 92
        %v370 = vpop.permute.xlu0 %369
        %371 = vrot.lane.b32.xlu0 %v304, 92
        %v372 = vpop.permute.xlu0 %371
        %373 = vrot.lane.b32.xlu0 %v305, 92
        %v374 = vpop.permute.xlu0 %373
        %375 = vrot.lane.b32.xlu0 %v306, 92
        %v376 = vpop.permute.xlu0 %375
        %vm377 = vcmask 752640
        %v378 = vsel %vm377, %v370, %v372
        %v379 = vsel %vm377, %v372, %v374
        %v380 = vsel %vm377, %v374, %v376
        %381 = vrot.lane.b32.xlu0 %v303, 91
        %v382 = vpop.permute.xlu0 %381
        %383 = vrot.lane.b32.xlu0 %v304, 91
        %v384 = vpop.permute.xlu0 %383
        %385 = vrot.lane.b32.xlu0 %v305, 91
        %v386 = vpop.permute.xlu0 %385
        %387 = vrot.lane.b32.xlu0 %v306, 91
        %v388 = vpop.permute.xlu0 %387
        %vm389 = vcmask 744448
        %v390 = vsel %vm389, %v382, %v384
        %v391 = vsel %vm389, %v384, %v386
        %v392 = vsel %vm389, %v386, %v388
        %393 = vrot.lane.b32.xlu0 %v303, 90
        %v394 = vpop.permute.xlu0 %393
        %395 = vrot.lane.b32.xlu0 %v304, 90
        %v396 = vpop.permute.xlu0 %395
        %397 = vrot.lane.b32.xlu0 %v305, 90
        %v398 = vpop.permute.xlu0 %397
        %399 = vrot.lane.b32.xlu0 %v306, 90
        %v400 = vpop.permute.xlu0 %399
        %vm401 = vcmask 736256
        %v402 = vsel %vm401, %v394, %v396
        %v403 = vsel %vm401, %v396, %v398
        %v404 = vsel %vm401, %v398, %v400
        %406 = vset.pattern.permute.xlu0 0
        %407 = vperm.xlu0 %406, %v297
        %v408 = vpop.permute.xlu0 %407
        %410 = vrot.lane.b32.xlu0 %v302, 19
        %v411 = vpop.permute.xlu0 %410
        %412 = vrot.lane.b32.xlu0 %v303, 19
        %v413 = vpop.permute.xlu0 %412
        %414 = vrot.lane.b32.xlu0 %v304, 19
        %v415 = vpop.permute.xlu0 %414
        %416 = vrot.lane.b32.xlu0 %v305, 19
        %v417 = vpop.permute.xlu0 %416
        %418 = vrot.lane.b32.xlu0 %v320, 19
        %v419 = vpop.permute.xlu0 %418
        %420 = vrot.lane.b32.xlu0 %v321, 19
        %v421 = vpop.permute.xlu0 %420
        %422 = vrot.lane.b32.xlu0 %v322, 19
        %v423 = vpop.permute.xlu0 %422
        %424 = vrot.lane.b32.xlu0 %v318, 19
        %v425 = vpop.permute.xlu0 %424
        %426 = vrot.lane.b32.xlu0 %v332, 19
        %v427 = vpop.permute.xlu0 %426
        %428 = vrot.lane.b32.xlu0 %v333, 19
        %v429 = vpop.permute.xlu0 %428
        %430 = vrot.lane.b32.xlu0 %v334, 19
        %v431 = vpop.permute.xlu0 %430
        %432 = vrot.lane.b32.xlu0 %v330, 19
        %v433 = vpop.permute.xlu0 %432
        %434 = vrot.lane.b32.xlu0 %v344, 19
        %v435 = vpop.permute.xlu0 %434
        %436 = vrot.lane.b32.xlu0 %v345, 19
        %v437 = vpop.permute.xlu0 %436
        %438 = vrot.lane.b32.xlu0 %v346, 19
        %v439 = vpop.permute.xlu0 %438
        %440 = vrot.lane.b32.xlu0 %v342, 19
        %v441 = vpop.permute.xlu0 %440
        %442 = vrot.lane.b32.xlu0 %v348, 19
        %v443 = vpop.permute.xlu0 %442
        %444 = vrot.lane.b32.xlu0 %v354, 19
        %v445 = vpop.permute.xlu0 %444
        %446 = vrot.lane.b32.xlu0 %v355, 19
        %v447 = vpop.permute.xlu0 %446
        %448 = vrot.lane.b32.xlu0 %v352, 19
        %v449 = vpop.permute.xlu0 %448
        %450 = vrot.lane.b32.xlu0 %v358, 19
        %v451 = vpop.permute.xlu0 %450
        %452 = vrot.lane.b32.xlu0 %v366, 19
        %v453 = vpop.permute.xlu0 %452
        %454 = vrot.lane.b32.xlu0 %v367, 19
        %v455 = vpop.permute.xlu0 %454
        %456 = vrot.lane.b32.xlu0 %v368, 19
        %v457 = vpop.permute.xlu0 %456
        %458 = vrot.lane.b32.xlu0 %v370, 19
        %v459 = vpop.permute.xlu0 %458
        %460 = vrot.lane.b32.xlu0 %v378, 19
        %v461 = vpop.permute.xlu0 %460
        %462 = vrot.lane.b32.xlu0 %v379, 19
        %v463 = vpop.permute.xlu0 %462
        %464 = vrot.lane.b32.xlu0 %v380, 19
        %v465 = vpop.permute.xlu0 %464
        %466 = vrot.lane.b32.xlu0 %v382, 19
        %v467 = vpop.permute.xlu0 %466
        %468 = vrot.lane.b32.xlu0 %v390, 19
        %v469 = vpop.permute.xlu0 %468
        %470 = vrot.lane.b32.xlu0 %v391, 19
        %v471 = vpop.permute.xlu0 %470
        %472 = vrot.lane.b32.xlu0 %v392, 19
        %v473 = vpop.permute.xlu0 %472
        %474 = vrot.lane.b32.xlu0 %v394, 19
        %v475 = vpop.permute.xlu0 %474
        %476 = vrot.lane.b32.xlu0 %v402, 19
        %v477 = vpop.permute.xlu0 %476
        %478 = vrot.lane.b32.xlu0 %v403, 19
        %v479 = vpop.permute.xlu0 %478
        %480 = vrot.lane.b32.xlu0 %v404, 19
        %v481 = vpop.permute.xlu0 %480
        %vm482 = vcmask 154624
        %v483 = vsel %vm482, %v411, %v413
        %v484 = vsel %vm482, %v413, %v415
        %v485 = vsel %vm482, %v415, %v417
        %v486 = vsel %vm482, %v419, %v421
        %v487 = vsel %vm482, %v421, %v423
        %v488 = vsel %vm482, %v423, %v425
        %v489 = vsel %vm482, %v427, %v429
        %v490 = vsel %vm482, %v429, %v431
        %v491 = vsel %vm482, %v431, %v433
        %v492 = vsel %vm482, %v435, %v437
        %v493 = vsel %vm482, %v437, %v439
        %v494 = vsel %vm482, %v439, %v441
        %v495 = vsel %vm482, %v443, %v445
        %v496 = vsel %vm482, %v445, %v447
        %v497 = vsel %vm482, %v447, %v449
        %v498 = vsel %vm482, %v451, %v453
        %v499 = vsel %vm482, %v453, %v455
        %v500 = vsel %vm482, %v455, %v457
        %v501 = vsel %vm482, %v459, %v461
        %v502 = vsel %vm482, %v461, %v463
        %v503 = vsel %vm482, %v463, %v465
        %v504 = vsel %vm482, %v467, %v469
        %v505 = vsel %vm482, %v469, %v471
        %v506 = vsel %vm482, %v471, %v473
        %v507 = vsel %vm482, %v475, %v477
        %v508 = vsel %vm482, %v477, %v479
        %v509 = vsel %vm482, %v479, %v481
        %vm537 = vcmask 588800
        %v539 = vsel %vm537, %v296, 0
        %541 = vmatprep.subr.mxu0 %v484
        %542 = vmatpush1.msra.mxu0 %v483
        %543 = vmatprep.subr.mxu0 %v487
        %544 = vmatpush1.msra.mxu0 %v486
        %545 = vmatprep.subr.mxu0 %v490
        %546 = vmatpush1.msra.mxu0 %v489
        %547 = vmatprep.subr.mxu0 %v493
        %548 = vmatpush1.msra.mxu0 %v492
        %549 = vmatprep.subr.mxu0 %v496
        %550 = vmatpush1.msra.mxu0 %v495
        %551 = vmatprep.subr.mxu0 %v499
        %552 = vmatpush1.msra.mxu0 %v498
        %553 = vmatprep.subr.mxu0 %v502
        %554 = vmatpush1.msra.mxu0 %v501
        %555 = vmatprep.subr.mxu0 %v505
        %556 = vmatpush1.msra.mxu0 %v504
        %557 = vmatprep.subr.mxu0 %v508
        %558 = vmatpush1.msra.mxu0 %v507
        %559 = vmatprep.subr.mxu0 0.0
        %560 = vmatpush1.msra.mxu0 0.0
        %561 = vmatprep.subr.mxu0 0.0
        %562 = vmatpush1.msra.mxu0 0.0
        %563 = vmatprep.subr.mxu0 0.0
        %564 = vmatpush1.msra.mxu0 0.0
        %565 = vmatprep.subr.mxu0 0.0
        %566 = vmatpush1.msra.mxu0 0.0
        %567 = vmatprep.subr.mxu0 0.0
        %568 = vmatpush1.msra.mxu0 0.0
        %569 = vmatprep.subr.mxu0 0.0
        %570 = vmatpush1.msra.mxu0 0.0
        %571 = vmatprep.subr.mxu0 0.0
        %572 = vmatpush1.msra.mxu0 0.0
        %573 = vmatprep.subr.mxu0 0.0
        %574 = vmatpush1.msra.mxu0 0.0
        %575 = vmatprep.subr.mxu0 0.0
        %576 = vmatpush1.msra.mxu0 0.0
        %577 = vmatprep.subr.mxu0 0.0
        %578 = vmatpush1.msra.mxu0 0.0
        %579 = vmatprep.subr.mxu0 0.0
        %580 = vmatpush1.msra.mxu0 0.0
        %581 = vmatprep.subr.mxu0 0.0
        %582 = vmatpush1.msra.mxu0 0.0
        %583 = vmatprep.subr.mxu0 0.0
        %584 = vmatpush1.msra.mxu0 0.0
        %585 = vmatprep.subr.mxu0 0.0
        %586 = vmatpush1.msra.mxu0 0.0
        %587 = vmatprep.subr.mxu0 0.0
        %588 = vmatpush1.msra.mxu0 0.0
        %589 = vmatprep.subr.mxu0 0.0
        %590 = vmatpush1.msra.mxu0 0.0
        %591 = vmatprep.subr.mxu0 0.0
        %592 = vmatpush1.msra.mxu0 0.0
        %593 = vmatprep.subr.mxu0 0.0
        %594 = vmatpush1.msra.mxu0 0.0
        %595 = vmatprep.subr.mxu0 0.0
        %596 = vmatpush1.msra.mxu0 0.0
        %597 = vmatprep.subr.mxu0 0.0
        %598 = vmatpush1.msra.mxu0 0.0
        %599 = vmatprep.subr.mxu0 0.0
        %600 = vmatpush1.msra.mxu0 0.0
        %601 = vmatprep.subr.mxu0 0.0
        %602 = vmatpush1.msra.mxu0 0.0
        %603 = vmatprep.subr.mxu0 0.0
        %604 = vmatpush1.msra.mxu0 0.0
        %605 = vmatprep.mubr.f32.mxu0 0.0
        %606 = vmatmul.mubr.f32.gmra.mrb[0].mxu0 %v539
        %v607 = vpop.f32.mrb[0].mxu0
        %v608 = vadd.f32 %v408, %v607
        %v609 = vpop.f32.mrb[0].mxu0
        %v610 = vadd.f32 %v408, %v609
        %611 = vdwg.mxu0
        %612 = vmatprep.subr.mxu0 0.0
        %613 = vmatpush1.msra.mxu0 %v485
        %614 = vmatprep.subr.mxu0 0.0
        %615 = vmatpush1.msra.mxu0 %v488
        %616 = vmatprep.subr.mxu0 0.0
        %617 = vmatpush1.msra.mxu0 %v491
        %618 = vmatprep.subr.mxu0 0.0
        %619 = vmatpush1.msra.mxu0 %v494
        %620 = vmatprep.subr.mxu0 0.0
        %621 = vmatpush1.msra.mxu0 %v497
        %622 = vmatprep.subr.mxu0 0.0
        %623 = vmatpush1.msra.mxu0 %v500
        %624 = vmatprep.subr.mxu0 0.0
        %625 = vmatpush1.msra.mxu0 %v503
        %626 = vmatprep.subr.mxu0 0.0
        %627 = vmatpush1.msra.mxu0 %v506
        %628 = vmatprep.subr.mxu0 0.0
        %629 = vmatpush1.msra.mxu0 %v509
        %630 = vmatprep.subr.mxu0 0.0
        %631 = vmatpush1.msra.mxu0 0.0
        %632 = vmatprep.subr.mxu0 0.0
        %633 = vmatpush1.msra.mxu0 0.0
        %634 = vmatprep.subr.mxu0 0.0
        %635 = vmatpush1.msra.mxu0 0.0
        %636 = vmatprep.subr.mxu0 0.0
        %637 = vmatpush1.msra.mxu0 0.0
        %638 = vmatprep.subr.mxu0 0.0
        %639 = vmatpush1.msra.mxu0 0.0
        %640 = vmatprep.subr.mxu0 0.0
        %641 = vmatpush1.msra.mxu0 0.0
        %642 = vmatprep.subr.mxu0 0.0
        %643 = vmatpush1.msra.mxu0 0.0
        %644 = vmatprep.subr.mxu0 0.0
        %645 = vmatpush1.msra.mxu0 0.0
        %646 = vmatprep.subr.mxu0 0.0
        %647 = vmatpush1.msra.mxu0 0.0
        %648 = vmatprep.subr.mxu0 0.0
        %649 = vmatpush1.msra.mxu0 0.0
        %650 = vmatprep.subr.mxu0 0.0
        %651 = vmatpush1.msra.mxu0 0.0
        %652 = vmatprep.subr.mxu0 0.0
        %653 = vmatpush1.msra.mxu0 0.0
        %654 = vmatprep.subr.mxu0 0.0
        %655 = vmatpush1.msra.mxu0 0.0
        %656 = vmatprep.subr.mxu0 0.0
        %657 = vmatpush1.msra.mxu0 0.0
        %658 = vmatprep.subr.mxu0 0.0
        %659 = vmatpush1.msra.mxu0 0.0
        %660 = vmatprep.subr.mxu0 0.0
        %661 = vmatpush1.msra.mxu0 0.0
        %662 = vmatprep.subr.mxu0 0.0
        %663 = vmatpush1.msra.mxu0 0.0
        %664 = vmatprep.subr.mxu0 0.0
        %665 = vmatpush1.msra.mxu0 0.0
        %666 = vmatprep.subr.mxu0 0.0
        %667 = vmatpush1.msra.mxu0 0.0
        %668 = vmatprep.subr.mxu0 0.0
        %669 = vmatpush1.msra.mxu0 0.0
        %670 = vmatprep.subr.mxu0 0.0
        %671 = vmatpush1.msra.mxu0 0.0
        %672 = vmatprep.subr.mxu0 0.0
        %673 = vmatpush1.msra.mxu0 0.0
        %674 = vmatprep.subr.mxu0 0.0
        %675 = vmatpush1.msra.mxu0 0.0
        %676 = vmatprep.mubr.f32.mxu0 0.0
        %677 = vmatmul.mubr.f32.gmra.mrb[0].mxu0 %v539
        %v678 = vpop.f32.mrb[0].mxu0
        %v679 = vadd.f32 %v408, %v678
        %v680 = vpop.f32.mrb[0].mxu0
        %681 = vdwg.mxu0
        %vm682 = vcmp.gt.f32.partialorder %v608, 0.0
        %vm683 = vcmp.gt.f32.partialorder %v610, 0.0
        %vm684 = vcmp.gt.f32.partialorder %v679, 0.0
        %v685 = vstv %s301
        %v686 = vmul.f32 %v685, %v608
        %v687 = vmul.f32 %v685, %v610
        %v688 = vmul.f32 %v685, %v679
        %v689 = vsel %vm682, %v608, %v686
        %v690 = vsel %vm683, %v610, %v687
        %v691 = vsel %vm684, %v679, %v688
        %v693 = vlaneseq
        %v694 = vshrl.u32 %v693, 7
        %v695 = vsub.s32 0, %v694
        %v696 = vrot.slane %v300, %v695
        %v697 = vlaneseq
        %v698 = vshrl.u32 %v697, 7
        %v699 = vsub.s32 1, %v698
        %v700 = vrot.slane %v300, %v699
        %v701 = vlaneseq
        %v702 = vshrl.u32 %v701, 7
        %v703 = vsub.s32 2, %v702
        %v704 = vrot.slane %v300, %v703
        %v708 = vmul.f32 %v689, %v696
        %v709 = vmul.f32 %v690, %v700
        %v710 = vmul.f32 %v691, %v704
        %715 = vrot.lane.b32.xlu0 0.0, 127
        %v716 = vpop.permute.xlu0 %715
        %717 = vrot.lane.b32.xlu0 %v708, 127
        %v718 = vpop.permute.xlu0 %717
        %719 = vrot.lane.b32.xlu0 %v709, 127
        %v720 = vpop.permute.xlu0 %719
        %721 = vrot.lane.b32.xlu0 %v710, 127
        %v722 = vpop.permute.xlu0 %721
        %v723 = vsel %vm319, %v716, %v718
        %v724 = vsel %vm319, %v718, %v720
        %v725 = vsel %vm319, %v720, %v722
        %726 = vrot.lane.b32.xlu0 0.0, 126
        %v727 = vpop.permute.xlu0 %726
        %728 = vrot.lane.b32.xlu0 %v708, 126
        %v729 = vpop.permute.xlu0 %728
        %730 = vrot.lane.b32.xlu0 %v709, 126
        %v731 = vpop.permute.xlu0 %730
        %732 = vrot.lane.b32.xlu0 %v710, 126
        %v733 = vpop.permute.xlu0 %732
        %v734 = vsel %vm331, %v727, %v729
        %v735 = vsel %vm331, %v729, %v731
        %v736 = vsel %vm331, %v731, %v733
        %737 = vrot.lane.b32.xlu0 0.0, 110
        %v738 = vpop.permute.xlu0 %737
        %739 = vrot.lane.b32.xlu0 %v708, 110
        %v740 = vpop.permute.xlu0 %739
        %741 = vrot.lane.b32.xlu0 %v709, 110
        %v742 = vpop.permute.xlu0 %741
        %743 = vrot.lane.b32.xlu0 %v710, 110
        %v744 = vpop.permute.xlu0 %743
        %v745 = vsel %vm343, %v738, %v740
        %v746 = vsel %vm343, %v740, %v742
        %v747 = vsel %vm343, %v742, %v744
        %748 = vrot.lane.b32.xlu0 %v708, 109
        %v749 = vpop.permute.xlu0 %748
        %750 = vrot.lane.b32.xlu0 %v709, 109
        %v751 = vpop.permute.xlu0 %750
        %752 = vrot.lane.b32.xlu0 %v710, 109
        %v753 = vpop.permute.xlu0 %752
        %v754 = vsel %vm353, %v749, %v751
        %v755 = vsel %vm353, %v751, %v753
        %756 = vrot.lane.b32.xlu0 %v708, 108
        %v757 = vpop.permute.xlu0 %756
        %758 = vrot.lane.b32.xlu0 %v709, 108
        %v759 = vpop.permute.xlu0 %758
        %760 = vrot.lane.b32.xlu0 %v710, 108
        %v761 = vpop.permute.xlu0 %760
        %762 = vrot.lane.b32.xlu0 0.0, 108
        %v763 = vpop.permute.xlu0 %762
        %v764 = vsel %vm365, %v757, %v759
        %v765 = vsel %vm365, %v759, %v761
        %v766 = vsel %vm365, %v761, %v763
        %767 = vrot.lane.b32.xlu0 %v708, 92
        %v768 = vpop.permute.xlu0 %767
        %769 = vrot.lane.b32.xlu0 %v709, 92
        %v770 = vpop.permute.xlu0 %769
        %771 = vrot.lane.b32.xlu0 %v710, 92
        %v772 = vpop.permute.xlu0 %771
        %773 = vrot.lane.b32.xlu0 0.0, 92
        %v774 = vpop.permute.xlu0 %773
        %v775 = vsel %vm377, %v768, %v770
        %v776 = vsel %vm377, %v770, %v772
        %v777 = vsel %vm377, %v772, %v774
        %778 = vrot.lane.b32.xlu0 %v708, 91
        %v779 = vpop.permute.xlu0 %778
        %780 = vrot.lane.b32.xlu0 %v709, 91
        %v781 = vpop.permute.xlu0 %780
        %782 = vrot.lane.b32.xlu0 %v710, 91
        %v783 = vpop.permute.xlu0 %782
        %784 = vrot.lane.b32.xlu0 0.0, 91
        %v785 = vpop.permute.xlu0 %784
        %v786 = vsel %vm389, %v779, %v781
        %v787 = vsel %vm389, %v781, %v783
        %v788 = vsel %vm389, %v783, %v785
        %789 = vrot.lane.b32.xlu0 %v708, 90
        %v790 = vpop.permute.xlu0 %789
        %791 = vrot.lane.b32.xlu0 %v709, 90
        %v792 = vpop.permute.xlu0 %791
        %793 = vrot.lane.b32.xlu0 %v710, 90
        %v794 = vpop.permute.xlu0 %793
        %795 = vrot.lane.b32.xlu0 0.0, 90
        %v796 = vpop.permute.xlu0 %795
        %v797 = vsel %vm401, %v790, %v792
        %v798 = vsel %vm401, %v792, %v794
        %v799 = vsel %vm401, %v794, %v796
        %801 = vset.pattern.permute.xlu0 0
        %802 = vperm.xlu0 %801, %v299
        %v803 = vpop.permute.xlu0 %802
        %805 = vrot.lane.b32.xlu0 0.0, 19
        %v806 = vpop.permute.xlu0 %805
        %807 = vrot.lane.b32.xlu0 %v708, 19
        %v808 = vpop.permute.xlu0 %807
        %809 = vrot.lane.b32.xlu0 %v709, 19
        %v810 = vpop.permute.xlu0 %809
        %811 = vrot.lane.b32.xlu0 %v710, 19
        %v812 = vpop.permute.xlu0 %811
        %813 = vrot.lane.b32.xlu0 %v723, 19
        %v814 = vpop.permute.xlu0 %813
        %815 = vrot.lane.b32.xlu0 %v724, 19
        %v816 = vpop.permute.xlu0 %815
        %817 = vrot.lane.b32.xlu0 %v725, 19
        %v818 = vpop.permute.xlu0 %817
        %819 = vrot.lane.b32.xlu0 %v722, 19
        %v820 = vpop.permute.xlu0 %819
        %821 = vrot.lane.b32.xlu0 %v734, 19
        %v822 = vpop.permute.xlu0 %821
        %823 = vrot.lane.b32.xlu0 %v735, 19
        %v824 = vpop.permute.xlu0 %823
        %825 = vrot.lane.b32.xlu0 %v736, 19
        %v826 = vpop.permute.xlu0 %825
        %827 = vrot.lane.b32.xlu0 %v733, 19
        %v828 = vpop.permute.xlu0 %827
        %829 = vrot.lane.b32.xlu0 %v745, 19
        %v830 = vpop.permute.xlu0 %829
        %831 = vrot.lane.b32.xlu0 %v746, 19
        %v832 = vpop.permute.xlu0 %831
        %833 = vrot.lane.b32.xlu0 %v747, 19
        %v834 = vpop.permute.xlu0 %833
        %835 = vrot.lane.b32.xlu0 %v744, 19
        %v836 = vpop.permute.xlu0 %835
        %837 = vrot.lane.b32.xlu0 %v749, 19
        %v838 = vpop.permute.xlu0 %837
        %839 = vrot.lane.b32.xlu0 %v754, 19
        %v840 = vpop.permute.xlu0 %839
        %841 = vrot.lane.b32.xlu0 %v755, 19
        %v842 = vpop.permute.xlu0 %841
        %843 = vrot.lane.b32.xlu0 %v753, 19
        %v844 = vpop.permute.xlu0 %843
        %845 = vrot.lane.b32.xlu0 %v757, 19
        %v846 = vpop.permute.xlu0 %845
        %847 = vrot.lane.b32.xlu0 %v764, 19
        %v848 = vpop.permute.xlu0 %847
        %849 = vrot.lane.b32.xlu0 %v765, 19
        %v850 = vpop.permute.xlu0 %849
        %851 = vrot.lane.b32.xlu0 %v766, 19
        %v852 = vpop.permute.xlu0 %851
        %853 = vrot.lane.b32.xlu0 %v768, 19
        %v854 = vpop.permute.xlu0 %853
        %855 = vrot.lane.b32.xlu0 %v775, 19
        %v856 = vpop.permute.xlu0 %855
        %857 = vrot.lane.b32.xlu0 %v776, 19
        %v858 = vpop.permute.xlu0 %857
        %859 = vrot.lane.b32.xlu0 %v777, 19
        %v860 = vpop.permute.xlu0 %859
        %861 = vrot.lane.b32.xlu0 %v779, 19
        %v862 = vpop.permute.xlu0 %861
        %863 = vrot.lane.b32.xlu0 %v786, 19
        %v864 = vpop.permute.xlu0 %863
        %865 = vrot.lane.b32.xlu0 %v787, 19
        %v866 = vpop.permute.xlu0 %865
        %867 = vrot.lane.b32.xlu0 %v788, 19
        %v868 = vpop.permute.xlu0 %867
        %869 = vrot.lane.b32.xlu0 %v790, 19
        %v870 = vpop.permute.xlu0 %869
        %871 = vrot.lane.b32.xlu0 %v797, 19
        %v872 = vpop.permute.xlu0 %871
        %873 = vrot.lane.b32.xlu0 %v798, 19
        %v874 = vpop.permute.xlu0 %873
        %875 = vrot.lane.b32.xlu0 %v799, 19
        %v876 = vpop.permute.xlu0 %875
        %v877 = vsel %vm482, %v806, %v808
        %v878 = vsel %vm482, %v808, %v810
        %v879 = vsel %vm482, %v810, %v812
        %v880 = vsel %vm482, %v814, %v816
        %v881 = vsel %vm482, %v816, %v818
        %v882 = vsel %vm482, %v818, %v820
        %v883 = vsel %vm482, %v822, %v824
        %v884 = vsel %vm482, %v824, %v826
        %v885 = vsel %vm482, %v826, %v828
        %v886 = vsel %vm482, %v830, %v832
        %v887 = vsel %vm482, %v832, %v834
        %v888 = vsel %vm482, %v834, %v836
        %v889 = vsel %vm482, %v838, %v840
        %v890 = vsel %vm482, %v840, %v842
        %v891 = vsel %vm482, %v842, %v844
        %v892 = vsel %vm482, %v846, %v848
        %v893 = vsel %vm482, %v848, %v850
        %v894 = vsel %vm482, %v850, %v852
        %v895 = vsel %vm482, %v854, %v856
        %v896 = vsel %vm482, %v856, %v858
        %v897 = vsel %vm482, %v858, %v860
        %v898 = vsel %vm482, %v862, %v864
        %v899 = vsel %vm482, %v864, %v866
        %v900 = vsel %vm482, %v866, %v868
        %v901 = vsel %vm482, %v870, %v872
        %v902 = vsel %vm482, %v872, %v874
        %v903 = vsel %vm482, %v874, %v876
        %v932 = vsel %vm537, %v298, 0
        %934 = vmatprep.subr.mxu0 %v878
        %935 = vmatpush1.msra.mxu0 %v877
        %936 = vmatprep.subr.mxu0 %v881
        %937 = vmatpush1.msra.mxu0 %v880
        %938 = vmatprep.subr.mxu0 %v884
        %939 = vmatpush1.msra.mxu0 %v883
        %940 = vmatprep.subr.mxu0 %v887
        %941 = vmatpush1.msra.mxu0 %v886
        %942 = vmatprep.subr.mxu0 %v890
        %943 = vmatpush1.msra.mxu0 %v889
        %944 = vmatprep.subr.mxu0 %v893
        %945 = vmatpush1.msra.mxu0 %v892
        %946 = vmatprep.subr.mxu0 %v896
        %947 = vmatpush1.msra.mxu0 %v895
        %948 = vmatprep.subr.mxu0 %v899
        %949 = vmatpush1.msra.mxu0 %v898
        %950 = vmatprep.subr.mxu0 %v902
        %951 = vmatpush1.msra.mxu0 %v901
        %952 = vmatprep.subr.mxu0 0.0
        %953 = vmatpush1.msra.mxu0 0.0
        %954 = vmatprep.subr.mxu0 0.0
        %955 = vmatpush1.msra.mxu0 0.0
        %956 = vmatprep.subr.mxu0 0.0
        %957 = vmatpush1.msra.mxu0 0.0
        %958 = vmatprep.subr.mxu0 0.0
        %959 = vmatpush1.msra.mxu0 0.0
        %960 = vmatprep.subr.mxu0 0.0
        %961 = vmatpush1.msra.mxu0 0.0
        %962 = vmatprep.subr.mxu0 0.0
        %963 = vmatpush1.msra.mxu0 0.0
        %964 = vmatprep.subr.mxu0 0.0
        %965 = vmatpush1.msra.mxu0 0.0
        %966 = vmatprep.subr.mxu0 0.0
        %967 = vmatpush1.msra.mxu0 0.0
        %968 = vmatprep.subr.mxu0 0.0
        %969 = vmatpush1.msra.mxu0 0.0
        %970 = vmatprep.subr.mxu0 0.0
        %971 = vmatpush1.msra.mxu0 0.0
        %972 = vmatprep.subr.mxu0 0.0
        %973 = vmatpush1.msra.mxu0 0.0
        %974 = vmatprep.subr.mxu0 0.0
        %975 = vmatpush1.msra.mxu0 0.0
        %976 = vmatprep.subr.mxu0 0.0
        %977 = vmatpush1.msra.mxu0 0.0
        %978 = vmatprep.subr.mxu0 0.0
        %979 = vmatpush1.msra.mxu0 0.0
        %980 = vmatprep.subr.mxu0 0.0
        %981 = vmatpush1.msra.mxu0 0.0
        %982 = vmatprep.subr.mxu0 0.0
        %983 = vmatpush1.msra.mxu0 0.0
        %984 = vmatprep.subr.mxu0 0.0
        %985 = vmatpush1.msra.mxu0 0.0
        %986 = vmatprep.subr.mxu0 0.0
        %987 = vmatpush1.msra.mxu0 0.0
        %988 = vmatprep.subr.mxu0 0.0
        %989 = vmatpush1.msra.mxu0 0.0
        %990 = vmatprep.subr.mxu0 0.0
        %991 = vmatpush1.msra.mxu0 0.0
        %992 = vmatprep.subr.mxu0 0.0
        %993 = vmatpush1.msra.mxu0 0.0
        %994 = vmatprep.subr.mxu0 0.0
        %995 = vmatpush1.msra.mxu0 0.0
        %996 = vmatprep.subr.mxu0 0.0
        %997 = vmatpush1.msra.mxu0 0.0
        %998 = vmatprep.mubr.f32.mxu0 0.0
        %999 = vmatmul.mubr.f32.gmra.mrb[0].mxu0 %v932
        %v1000 = vpop.f32.mrb[0].mxu0
        %v1001 = vadd.f32 %v803, %v1000
        %v1002 = vpop.f32.mrb[0].mxu0
        %v1003 = vadd.f32 %v803, %v1002
        %1004 = vdwg.mxu0
        %1005 = vmatprep.subr.mxu0 0.0
        %1006 = vmatpush1.msra.mxu0 %v879
        %1007 = vmatprep.subr.mxu0 0.0
        %1008 = vmatpush1.msra.mxu0 %v882
        %1009 = vmatprep.subr.mxu0 0.0
        %1010 = vmatpush1.msra.mxu0 %v885
        %1011 = vmatprep.subr.mxu0 0.0
        %1012 = vmatpush1.msra.mxu0 %v888
        %1013 = vmatprep.subr.mxu0 0.0
        %1014 = vmatpush1.msra.mxu0 %v891
        %1015 = vmatprep.subr.mxu0 0.0
        %1016 = vmatpush1.msra.mxu0 %v894
        %1017 = vmatprep.subr.mxu0 0.0
        %1018 = vmatpush1.msra.mxu0 %v897
        %1019 = vmatprep.subr.mxu0 0.0
        %1020 = vmatpush1.msra.mxu0 %v900
        %1021 = vmatprep.subr.mxu0 0.0
        %1022 = vmatpush1.msra.mxu0 %v903
        %1023 = vmatprep.subr.mxu0 0.0
        %1024 = vmatpush1.msra.mxu0 0.0
        %1025 = vmatprep.subr.mxu0 0.0
        %1026 = vmatpush1.msra.mxu0 0.0
        %1027 = vmatprep.subr.mxu0 0.0
        %1028 = vmatpush1.msra.mxu0 0.0
        %1029 = vmatprep.subr.mxu0 0.0
        %1030 = vmatpush1.msra.mxu0 0.0
        %1031 = vmatprep.subr.mxu0 0.0
        %1032 = vmatpush1.msra.mxu0 0.0
        %1033 = vmatprep.subr.mxu0 0.0
        %1034 = vmatpush1.msra.mxu0 0.0
        %1035 = vmatprep.subr.mxu0 0.0
        %1036 = vmatpush1.msra.mxu0 0.0
        %1037 = vmatprep.subr.mxu0 0.0
        %1038 = vmatpush1.msra.mxu0 0.0
        %1039 = vmatprep.subr.mxu0 0.0
        %1040 = vmatpush1.msra.mxu0 0.0
        %1041 = vmatprep.subr.mxu0 0.0
        %1042 = vmatpush1.msra.mxu0 0.0
        %1043 = vmatprep.subr.mxu0 0.0
        %1044 = vmatpush1.msra.mxu0 0.0
        %1045 = vmatprep.subr.mxu0 0.0
        %1046 = vmatpush1.msra.mxu0 0.0
        %1047 = vmatprep.subr.mxu0 0.0
        %1048 = vmatpush1.msra.mxu0 0.0
        %1049 = vmatprep.subr.mxu0 0.0
        %1050 = vmatpush1.msra.mxu0 0.0
        %1051 = vmatprep.subr.mxu0 0.0
        %1052 = vmatpush1.msra.mxu0 0.0
        %1053 = vmatprep.subr.mxu0 0.0
        %1054 = vmatpush1.msra.mxu0 0.0
        %1055 = vmatprep.subr.mxu0 0.0
        %1056 = vmatpush1.msra.mxu0 0.0
        %1057 = vmatprep.subr.mxu0 0.0
        %1058 = vmatpush1.msra.mxu0 0.0
        %1059 = vmatprep.subr.mxu0 0.0
        %1060 = vmatpush1.msra.mxu0 0.0
        %1061 = vmatprep.subr.mxu0 0.0
        %1062 = vmatpush1.msra.mxu0 0.0
        %1063 = vmatprep.subr.mxu0 0.0
        %1064 = vmatpush1.msra.mxu0 0.0
        %1065 = vmatprep.subr.mxu0 0.0
        %1066 = vmatpush1.msra.mxu0 0.0
        %1067 = vmatprep.subr.mxu0 0.0
        %1068 = vmatpush1.msra.mxu0 0.0
        %1069 = vmatprep.mubr.f32.mxu0 0.0
        %1070 = vmatmul.mubr.f32.gmra.mrb[0].mxu0 %v932
        %v1071 = vpop.f32.mrb[0].mxu0
        %v1072 = vadd.f32 %v803, %v1071
        %v1073 = vpop.f32.mrb[0].mxu0
        %1074 = vdwg.mxu0
        %v1075 = vadd.f32 %v1001, %v303
        %v1076 = vadd.f32 %v1003, %v304
        %v1077 = vadd.f32 %v1072, %v305
        %1078 = vst [vmem:[%s295] sm:$0xff] %v1075
        %1079 = vst [vmem:[%s295 + $0x8] sm:$0xff] %v1076
        %1080 = vst [vmem:[%s295 + $0x10] sm:$0xff] %v1077
        %s1081 = sand.u32 %s185, 1
        %s1082 = scalar_lea.sflag [#allocation5], %s1081
        %s1083 = sand.u32 %s185, 1
        %s1084 = smul.addr %s1083, 24
        %s1085 = scalar_lea.vmem [#allocation6], %s1084
        // Predicated region
        $region53: #{tpu_custom_call.1} parent=47 // pred_check
          %p1086 = pneg %p195
        $region54: #{tpu_custom_call.1} parent=47 // pred_check_branch
          %1088 = sbr.rel (%p1086) target = $region56
        $region55: #{tpu_custom_call.1} parent=47 // pred_region
          %s1090 = ssub.s32 384, 384
          %1091 = vsyncadd %s1082, %s1090
          %s1092 = smul.addr %s25, 3
          %s1093 = smul.addr %s1092, 128
          %s1094 = scalar_lea.hbm %s7, %s1093
          %s1096 = sshll.u32 %s1085, 4
          %s1097 = int_to_ptr.vmem [resolvable:$true] %s1096
          %1099 = dma.vmem_to_hbm [thread:$0]  %s1097, 384, %s1094, %s1082
        $region56: #{tpu_custom_call.1} parent=47 // pred_fallthru
          _
      $region48: #{tpu_custom_call.1} parent=5 // pred_fallthru
        _
      %p1100 = scmp.le.s32.totalorder 2, %s20
      // Predicated region
      $region57: #{tpu_custom_call.1} parent=5 // pred_check
        %p1101 = pneg %p1100
      $region58: #{tpu_custom_call.1} parent=5 // pred_check_branch
        %1103 = sbr.rel (%p1101) target = $region60
      $region59: #{tpu_custom_call.1} parent=5 // pred_region
        %s1104 = ssub.s32 %s20, 2
        // Predicated region
        $region61: #{tpu_custom_call.1} parent=59 // pred_check
          %p1105 = pneg %p201
        $region62: #{tpu_custom_call.1} parent=59 // pred_check_branch
          %1107 = sbr.rel (%p1105) target = $region64
        $region63: #{tpu_custom_call.1} parent=59 // pred_region
          %s1108 = sand.u32 %s186, 1
          %s1109 = scalar_lea.sflag [#allocation5], %s1108
          %s1110 = sand.u32 %s186, 1
          %s1111 = smul.addr %s1110, 24
          %s1112 = scalar_lea.vmem [#allocation6], %s1111
          %1113 = dma.done %s1109, 384
        $region64: #{tpu_custom_call.1} parent=59 // pred_fallthru
          _
      $region60: #{tpu_custom_call.1} parent=5 // pred_fallthru
        _
    $region6: #{tpu_custom_call.1} parent=1 // loop_footer
      %s24 = sadd.s32 1, %s20
    $region7: #{tpu_custom_call.1} parent=1 // loop_footer_branch
      %19 = sbr.rel target = $region3
    $region8: #{tpu_custom_call.1} parent=1 // loop_exit
      _
    %1114 = vsyncpa [#allocation4], 1
    %s1115 = scalar_lea.sflag [#allocation4], 1
    %1116 = vsyncpa %s1115, 1
    %1117 = vsyncpa [#allocation5], 1
    %s1118 = scalar_lea.sflag [#allocation5], 1
    %1119 = vsyncpa %s1118, 1

</llo_original>
